<compile_context>
chip_gen: v6e
topology: v6e:2x2x1
jax: 0.10.0
libtpu: 0.0.40
codegen_flags: <defaults>
</compile_context>

<pallas_src>
import jax
import jax.numpy as jnp
from jax.experimental import pallas as pl
from jax.experimental.pallas import tpu as pltpu


def _cdiv(a, b):
    return (a + b - 1) // b


def _round_up(a, b):
    return _cdiv(a, b) * b


def _sublane_multiple(dtype):
    # f32 -> 8, bf16/f16 -> 16, int8/fp8 -> 32 (sub-32-bit dtypes pack sublanes).
    itemsize = jnp.dtype(dtype).itemsize
    return max(8, 32 // max(itemsize, 1))


# --------------------- single-pass kernel (whole H*W row in one block) -------

def _log_softmax_rows_kernel(x_ref, o_ref):
    # x_ref / o_ref: (row_tile, hw) block in VMEM.  hw is the full (possibly
    # non-128-multiple) spatial size: Mosaic masks the padded lanes in the
    # reductions, so no host-side padding or in-kernel iota masking is needed.
    x = x_ref[...].astype(jnp.float32)                          # stable + v5e-safe
    m = jnp.max(x, axis=-1, keepdims=True)                      # XLU row reduce
    shifted = x - m                                             # VPU
    denom = jnp.sum(jnp.exp(shifted), axis=-1, keepdims=True)   # EUP + XLU
    o_ref[...] = (shifted - jnp.log(denom)).astype(o_ref.dtype)


# --------------------- large-H*W fallback: two streaming passes --------------

def _make_lse_kernel(hw, hw_tile):
    def kernel(x_ref, lse_ref, m_sc, l_sc):
        k = pl.program_id(1)

        @pl.when(k == 0)
        def _():
            m_sc[...] = jnp.full_like(m_sc, -jnp.inf)
            l_sc[...] = jnp.zeros_like(l_sc)

        x = x_ref[...].astype(jnp.float32)
        # Mask the partial edge block's garbage lanes with -inf (not finfo.min).
        col = k * hw_tile + jax.lax.broadcasted_iota(jnp.int32, x.shape, 1)
        x = jnp.where(col < hw, x, -jnp.inf)

        m_prev = m_sc[...]
        m_new = jnp.maximum(m_prev, jnp.max(x, axis=-1, keepdims=True))
        l_sc[...] = (l_sc[...] * jnp.exp(m_prev - m_new)
                     + jnp.sum(jnp.exp(x - m_new), axis=-1, keepdims=True))
        m_sc[...] = m_new

        @pl.when(k == pl.num_programs(1) - 1)
        def _():
            lse_ref[...] = m_sc[...] + jnp.log(l_sc[...])

    return kernel


def _sub_lse_kernel(x_ref, lse_ref, o_ref):
    o_ref[...] = (x_ref[...].astype(jnp.float32) - lse_ref[...]).astype(o_ref.dtype)


# --------------------------------- wrapper -----------------------------------

def softmax_log_probability_2d(x, *, row_tile=None, hw_tile=None):
    """x: (N, C, H, W) -> log(softmax over H*W per (n, c)); same shape/dtype."""
    N, C, H, W = x.shape
    rows, hw = N * C, H * W
    dtype = x.dtype
    itemsize = jnp.dtype(dtype).itemsize
    sublane = _sublane_multiple(dtype)
    hw_pad = _round_up(hw, 128)               # physical lane width of a VMEM row

    # Per-chip VMEM budget: 48 MiB on v7x (64 MiB physical), 96 MiB on v5e/v6e.
    try:
        vmem_cap = int(pltpu.get_tpu_info().vmem_capacity_bytes)
    except Exception:
        vmem_cap = 64 << 20                   # conservative (v7x-sized) fallback
    vmem_limit = min((vmem_cap * 3) // 4, 96 << 20)
    footprint_budget = (vmem_limit * 4) // 5  # ~20% headroom for compiler scratch

    # VMEM bytes per row of a single-pass block:
    #   2x(in) + 2x(out) double buffers + ~3 f32 temporaries (x, shifted, exp).
    per_row_vmem = hw_pad * (4 * itemsize + 3 * 4)

    x2d = x.reshape(rows, hw)

    use_single_pass = (hw_tile is None) and (sublane * per_row_vmem <= footprint_budget)

    if use_single_pass:
        # ---- 1 read + 1 write of x ----
        if row_tile is None:
            rt = max(sublane, (footprint_budget // per_row_vmem // sublane) * sublane)
        else:
            rt = _round_up(max(1, int(row_tile)), sublane)
        # >=2 grid steps (ideally >=4) so v7x's two TensorCores both run and
        # the in/out DMAs double-buffer; harmless on 1-TC v5e/v6e.
        if rows > sublane:
            min_steps = 4 if rows >= 4 * sublane else 2
            rt = min(rt, max(sublane, _round_up(_cdiv(rows, min_steps), sublane)))
        if rt > rows:
            rt = rows                          # full-dim block is always legal
        grid = (_cdiv(rows, rt),)

        cost = pl.CostEstimate(
            flops=5 * rows * hw,
            transcendentals=rows * hw + rows,  # exp per elem + log per row
            bytes_accessed=2 * rows * hw * itemsize,
        )
        out2d = pl.pallas_call(
            _log_softmax_rows_kernel,
            out_shape=jax.ShapeDtypeStruct((rows, hw), dtype),
            grid_spec=pltpu.PrefetchScalarGridSpec(
                num_scalar_prefetch=0,
                grid=grid,
                in_specs=[pl.BlockSpec((rt, hw), lambda i: (i, 0))],
                out_specs=pl.BlockSpec((rt, hw), lambda i: (i, 0)),
            ),
            compiler_params=pltpu.CompilerParams(
                dimension_semantics=("parallel",),
                vmem_limit_bytes=vmem_limit,
            ),
            cost_estimate=cost,
        )(x2d)
    else:
        # ---- very large H*W (or forced): 2 reads + 1 write of x ----
        rt = rows if rows < sublane else sublane
        if hw_tile is None:
            per_col_vmem = rt * (4 * itemsize + 3 * 4)
            ht = max(128, (footprint_budget // per_col_vmem // 128) * 128)
        else:
            ht = _round_up(max(1, int(hw_tile)), 128)
        ht = min(ht, hw_pad)
        row_grid = _cdiv(rows, rt)
        hw_grid = _cdiv(hw, ht)

        # Pass 1: online logsumexp per row (small VMEM accumulators).
        lse = pl.pallas_call(
            _make_lse_kernel(hw, ht),
            out_shape=jax.ShapeDtypeStruct((rows, 1), jnp.float32),
            grid_spec=pltpu.PrefetchScalarGridSpec(
                num_scalar_prefetch=0,
                grid=(row_grid, hw_grid),
                in_specs=[pl.BlockSpec((rt, ht), lambda i, k: (i, k))],
                out_specs=pl.BlockSpec((rt, 1), lambda i, k: (i, 0)),
                scratch_shapes=[pltpu.VMEM((rt, 1), jnp.float32),
                                pltpu.VMEM((rt, 1), jnp.float32)],
            ),
            compiler_params=pltpu.CompilerParams(
                dimension_semantics=("parallel", "arbitrary"),
                vmem_limit_bytes=vmem_limit,
            ),
        )(x2d)

        # Pass 2: out = x - lse (elementwise, streaming).
        out2d = pl.pallas_call(
            _sub_lse_kernel,
            out_shape=jax.ShapeDtypeStruct((rows, hw), dtype),
            grid_spec=pltpu.PrefetchScalarGridSpec(
                num_scalar_prefetch=0,
                grid=(row_grid, hw_grid),
                in_specs=[pl.BlockSpec((rt, ht), lambda i, k: (i, k)),
                          pl.BlockSpec((rt, 1), lambda i, k: (i, 0))],
                out_specs=pl.BlockSpec((rt, ht), lambda i, k: (i, k)),
            ),
            compiler_params=pltpu.CompilerParams(
                dimension_semantics=("parallel", "arbitrary"),
                vmem_limit_bytes=vmem_limit,
            ),
        )(x2d, lse)

    return out2d.reshape(N, C, H, W)


def _reference(x):
    # Pure-JAX reference mirroring the PyTorch per-channel loop.
    N, C, H, W = x.shape
    flat = x.reshape(N, C, H * W).astype(jnp.float32)
    sm = jax.nn.softmax(flat, axis=-1)
    return jnp.log(sm).reshape(N, C, H, W).astype(x.dtype)


if __name__ == "__main__":
    key = jax.random.PRNGKey(0)
    k0, k1, k2, k3 = jax.random.split(key, 4)

    # Case 1: lane-dense spatial size (16*16 = 256) — single-pass, one block.
    x = jax.random.normal(k0, (2, 4, 16, 16), dtype=jnp.float32)
    out = jax.block_until_ready(softmax_log_probability_2d(x))
    assert out.shape == x.shape
    assert jnp.allclose(out, _reference(x), atol=1e-5, rtol=1e-5), "mismatch (16x16)"

    # Case 2: ragged spatial size (7*7 = 49) and rows < sublane — full-dim blocks,
    # Mosaic lane masking, no host-side padding.
    y = jax.random.normal(k1, (2, 3, 7, 7), dtype=jnp.float32)
    out_y = jax.block_until_ready(softmax_log_probability_2d(y))
    assert out_y.shape == y.shape
    assert jnp.allclose(out_y, _reference(y), atol=1e-5, rtol=1e-5), "mismatch (7x7)"

    # Case 3: rows not a multiple of the row tile (partial edge row block) and
    # ragged H*W (12*11 = 132) — exercises multi-step row grid + edge masking.
    z = jax.random.normal(k2, (3, 5, 12, 11), dtype=jnp.float32)
    out_z = jax.block_until_ready(softmax_log_probability_2d(z))
    assert out_z.shape == z.shape
    assert jnp.allclose(out_z, _reference(z), atol=1e-5, rtol=1e-5), "mismatch (12x11)"

    # Case 4: force the large-H*W two-pass (online logsumexp) path on a small
    # shape (hw = 320 tiled at 128, ragged last tile) to validate it cheaply.
    w = jax.random.normal(k3, (2, 3, 16, 20), dtype=jnp.float32)
    out_w = jax.block_until_ready(softmax_log_probability_2d(w, hw_tile=128))
    assert out_w.shape == w.shape
    assert jnp.allclose(out_w, _reference(w), atol=1e-5, rtol=1e-5), "mismatch (tiled hw)"

    print("KERNEL_OK")
</pallas_src>

<mosaic_0001>
module attributes {stable_mosaic.version = 11 : i64} {
  func.func @_log_softmax_rows_kernel(%arg0: i32, %arg1: memref<8x256xf32, #tpu.memory_space<vmem>>, %arg2: memref<8x256xf32, #tpu.memory_space<vmem>>) attributes {dimension_semantics = [#tpu.dimension_semantics<parallel>], iteration_bounds = array<i64: 1>, scalar_prefetch = 0 : i64, scratch_operands = 0 : i64, tpu.core_type = #tpu.core_type<tc>, window_params = [{transform_indices = @transform_0, window_bounds = array<i64: 8, 256>}, {transform_indices = @transform_1, window_bounds = array<i64: 8, 256>}]} {
    %c0 = arith.constant 0 : index
    %c0_0 = arith.constant 0 : index
    %0 = vector.load %arg1[%c0, %c0_0] : memref<8x256xf32, #tpu.memory_space<vmem>>, vector<8x256xf32>
    %cst = arith.constant dense<0xFF800000> : vector<8xf32>
    %1 = vector.multi_reduction <maximumf>, %0, %cst [1] : vector<8x256xf32> to vector<8xf32>
    %2 = vector.shape_cast %1 : vector<8xf32> to vector<8x1xf32>
    %3 = vector.broadcast %2 : vector<8x1xf32> to vector<8x256xf32>
    %4 = arith.subf %0, %3 : vector<8x256xf32>
    %5 = math.exp %4 : vector<8x256xf32>
    %cst_1 = arith.constant dense<0.000000e+00> : vector<8xf32>
    %6 = vector.multi_reduction <add>, %5, %cst_1 [1] : vector<8x256xf32> to vector<8xf32>
    %7 = vector.shape_cast %6 : vector<8xf32> to vector<8x1xf32>
    %8 = math.log %7 : vector<8x1xf32>
    %9 = vector.broadcast %8 : vector<8x1xf32> to vector<8x256xf32>
    %10 = arith.subf %4, %9 : vector<8x256xf32>
    %c0_2 = arith.constant 0 : index
    %c0_3 = arith.constant 0 : index
    %11 = vector.load %arg2[%c0_2, %c0_3] : memref<8x256xf32, #tpu.memory_space<vmem>>, vector<8x256xf32>
    tpu.vector_store %arg2[%c0_2, %c0_3], %10 {strides = array<i32>} : memref<8x256xf32, #tpu.memory_space<vmem>>, vector<8x256xf32>,
    return
  }
  func.func @transform_0(%arg0: i32) -> (i32, i32) {
    %c0_i32 = arith.constant 0 : i32
    %c0_i32_0 = arith.constant 0 : i32
    return %arg0, %c0_i32 : i32, i32
  }
  func.func @transform_1(%arg0: i32) -> (i32, i32) {
    %c0_i32 = arith.constant 0 : i32
    %c0_i32_0 = arith.constant 0 : i32
    return %arg0, %c0_i32 : i32, i32
  }
}

</mosaic_0001>

<llo_original>
// kernel: tpu_custom_call.1
$region0: #{tpu_custom_call.1}
  #allocation0 [shape = 'u32[]', space=smem, size = 0x4, offset = 0x4, fixed_abs, tag = 'smem constant byte address 0x4 - core index']
  #allocation1 [shape = 'u32[144,128]{1,0:T(1,128)}', space=vmem, size = 0x12000, scoped, tag = 'internal scratch']
  %s0 = inlined_call_operand.hbm [shape: f32[8,256], index: 0, kind: input, shape index: {}]
  %s1 = inlined_call_operand.hbm [shape: f32[8,256], index: 1, kind: output, shape index: {}]
  %s2 = sld [smem:[#allocation0]]
  $region18: #{tpu_custom_call.1} parent=0
    _
  %s4 = ssub.s32 1, %s2
  %s5 = scalar_select 0, %s4, %s2
  $region1: #{tpu_custom_call.1} parent=0
    #allocation2 [shape = 'u8[8192]{0}', space=vmem, size = 0x2000, scoped, tag = 'input window, operand 0, single buffered']
    #allocation3 [shape = 's32[1]{0}', space=sflag, size = 0x4, scoped, tag = 'scoped memory for tpu_custom_call.1']
    #allocation4 [shape = 's32[1]{0}', space=sflag, size = 0x4, scoped, tag = 'scoped memory for tpu_custom_call.1']
    #allocation5 [shape = 'u8[8192]{0}', space=vmem, size = 0x2000, scoped, tag = 'output window, operand 0, single buffered']
    %6 = vsyncpa [#allocation3], 0
    %7 = vsyncpa [#allocation4], 0
    // Predicated region
    $region2: #{tpu_custom_call.1} parent=1 // pred_check
      _
    $region3: #{tpu_custom_call.1} parent=1 // pred_check_branch
      %9 = sbr.rel (0) target = $region5
    $region4: #{tpu_custom_call.1} parent=1 // pred_region
      %s11 = ssub.s32 256, 256
      %12 = vsyncadd [#allocation3], %s11
      %s14 = sshll.u32 [#allocation2], 4
      %s15 = int_to_ptr.vmem [resolvable:$true] %s14
      %17 = dma.hbm_to_vmem [thread:$0]  %s0, 256, %s15, [#allocation3]
    $region5: #{tpu_custom_call.1} parent=1 // pred_fallthru
      _
    // Predicated region
    $region6: #{tpu_custom_call.1} parent=1 // pred_check
      _
    $region7: #{tpu_custom_call.1} parent=1 // pred_check_branch
      %19 = sbr.rel (0) target = $region9
    $region8: #{tpu_custom_call.1} parent=1 // pred_region
      %20 = dma.done [#allocation3], 256
    $region9: #{tpu_custom_call.1} parent=1 // pred_fallthru
      _
    %v21 = vld [vmem:[#allocation2] sm:$0xff]
    %v22 = vld [vmem:[#allocation2 + $0x8] sm:$0xff]
    %v23 = vmax.f32 %v21, %v22
    %24 = vmax.xlane.f32.xlu0 %v23
    %v25 = vpop.xlane.xlu0 %24
    %v26 = vsub.f32 %v21, %v25
    %v27 = vsub.f32 %v22, %v25
    %v28 = vmul.f32 %v26, 1.442695
    %v29 = vpow.pop %v28
    %v30 = vmul.f32 %v27, 1.442695
    %v31 = vpow.pop %v30
    %v32 = vadd.f32 %v29, %v31
    %33 = vadd.xlane.f32.xlu0 %v32
    %v34 = vpop.xlane.xlu0 %33
    %v35 = vlog2.pop %v34
    %v36 = vmul.f32 %v35, 0.6931472
    %v37 = vsub.f32 %v26, %v36
    %v38 = vsub.f32 %v27, %v36
    %39 = vst [vmem:[#allocation5] sm:$0xff] %v37
    %40 = vst [vmem:[#allocation5 + $0x8] sm:$0xff] %v38
    // Predicated region
    $region10: #{tpu_custom_call.1} parent=1 // pred_check
      _
    $region11: #{tpu_custom_call.1} parent=1 // pred_check_branch
      %42 = sbr.rel (0) target = $region13
    $region12: #{tpu_custom_call.1} parent=1 // pred_region
      %s44 = ssub.s32 256, 256
      %45 = vsyncadd [#allocation4], %s44
      %s47 = sshll.u32 [#allocation5], 4
      %s48 = int_to_ptr.vmem [resolvable:$true] %s47
      %50 = dma.vmem_to_hbm [thread:$0]  %s48, 256, %s1, [#allocation4]
    $region13: #{tpu_custom_call.1} parent=1 // pred_fallthru
      _
    // Predicated region
    $region14: #{tpu_custom_call.1} parent=1 // pred_check
      _
    $region15: #{tpu_custom_call.1} parent=1 // pred_check_branch
      %52 = sbr.rel (0) target = $region17
    $region16: #{tpu_custom_call.1} parent=1 // pred_region
      %53 = dma.done [#allocation4], 256
    $region17: #{tpu_custom_call.1} parent=1 // pred_fallthru
      _
    %54 = vsyncpa [#allocation3], 1
    %55 = vsyncpa [#allocation4], 1

</llo_original>
